<compile_context>
chip_gen: v7x
topology: tpu7x:2x2x1
jax: 0.10.0
libtpu: 0.0.40
codegen_flags: <defaults>
</compile_context>

<pallas_src>
import functools

import jax
import jax.numpy as jnp
from jax.experimental import pallas as pl
from jax.experimental.pallas import tpu as pltpu


def _gelu_f32(x):
    # tanh-approximate GELU in f32 (same formula in kernel and reference).
    c = jnp.float32(0.7978845608028654)  # sqrt(2/pi)
    return 0.5 * x * (1.0 + jnp.tanh(c * (x + jnp.float32(0.044715) * x * x * x)))


def _rev_block_kernel(x_ref, wf_ref, bf_ref, wg_ref, bg_ref, o_ref, *, Dh):
    # x_ref block is (tm, D); the two halves are static lane slices
    # (tile-aligned views when Dh is a multiple of 128).
    x1 = x_ref[:, :Dh]
    x2 = x_ref[:, Dh:]

    # f(x2) = gelu(x2 @ Wf + bf)  -- MXU matmul, f32 accumulation.
    f_x2 = _gelu_f32(
        jnp.dot(x2, wf_ref[...], preferred_element_type=jnp.float32)
        + bf_ref[...].astype(jnp.float32)
    )
    y1 = x1 + f_x2.astype(x1.dtype)

    # g(y1) = gelu(y1 @ Wg + bg)
    g_y1 = _gelu_f32(
        jnp.dot(y1, wg_ref[...], preferred_element_type=jnp.float32)
        + bg_ref[...].astype(jnp.float32)
    )
    y2 = x2 + g_y1.astype(x2.dtype)

    # cat([y1, y2], dim=-1) done in-kernel: two lane-aligned, unmasked stores.
    o_ref[:, :Dh] = y1.astype(o_ref.dtype)
    o_ref[:, Dh:] = y2.astype(o_ref.dtype)


def _round_up(n, m):
    return ((n + m - 1) // m) * m


def _pick_row_tile(M, D, Dh, itemsize, *, tm_cap=1024, vmem_budget=32 * 1024 * 1024):
    """Largest multiple-of-8 row tile fitting the VMEM budget (<= tm_cap, <= M)."""
    # Resident params: 2 weights + 2 biases, conservatively count double buffers.
    weight_bytes = 2 * (2 * Dh * Dh + 2 * Dh) * itemsize
    # Per row: input block + output block, each double-buffered.
    per_row = 4 * D * itemsize
    headroom = 2 * 1024 * 1024  # compiler scratch / misc
    avail = max(vmem_budget - weight_bytes - headroom, per_row * 8)
    tm = (avail // per_row) // 8 * 8
    tm = int(max(8, min(tm, tm_cap, _round_up(M, 8))))
    return tm, weight_bytes, per_row


def reversible_block_forward(x, wf, bf, wg, bg):
    """Forward pass of ReversibleBlock_ with f/g = gelu(Linear).

    x:  (B, S, D), D even.
    wf, wg: (D//2, D//2); bf, bg: (1, D//2)
    Returns (y, states) with y = cat([y1, y2], dim=2), states = None.
    """
    B, S, D = x.shape
    assert D % 2 == 0, "feature dim must be even (chunked in half)"
    Dh = D // 2
    M = B * S

    # Free, contiguous reshape — no HBM copy.
    x_flat = x.reshape(M, D)

    itemsize = jnp.dtype(x.dtype).itemsize
    tm, weight_bytes, per_row = _pick_row_tile(M, D, Dh, itemsize)
    grid = (pl.cdiv(M, tm),)

    cost = pl.CostEstimate(
        flops=4 * M * Dh * Dh,                # two (M,Dh)x(Dh,Dh) matmuls
        transcendentals=2 * M * Dh,           # two tanh-GELUs over (M, Dh)
        bytes_accessed=(2 * M * D + 2 * Dh * Dh + 2 * Dh) * itemsize,
    )

    # VMEM limit: actual need plus margin, clamped to what v7x can scope.
    vmem_need = tm * per_row + weight_bytes
    vmem_limit = int(min(max(2 * vmem_need, 32 * 1024 * 1024), 64 * 1024 * 1024))

    # TODO(synk): for very large Dh (>= 2048 in f32) add a grid axis over the
    # weight columns instead of keeping the full (Dh, Dh) blocks resident.
    x_spec = pl.BlockSpec((tm, D), lambda i: (i, 0))
    w_spec = pl.BlockSpec((Dh, Dh), lambda i: (0, 0))   # resident across steps
    b_spec = pl.BlockSpec((1, Dh), lambda i: (0, 0))
    out_spec = pl.BlockSpec((tm, D), lambda i: (i, 0))

    y_flat = pl.pallas_call(
        functools.partial(_rev_block_kernel, Dh=Dh),
        out_shape=jax.ShapeDtypeStruct((M, D), x.dtype),
        grid_spec=pltpu.PrefetchScalarGridSpec(
            num_scalar_prefetch=0,
            grid=grid,
            in_specs=[x_spec, w_spec, b_spec, w_spec, b_spec],
            out_specs=out_spec,
        ),
        compiler_params=pltpu.CompilerParams(
            dimension_semantics=("parallel",),
            vmem_limit_bytes=vmem_limit,
        ),
        cost_estimate=cost,
    )(x_flat, wf, bf, wg, bg)

    y = y_flat.reshape(B, S, D)
    # TODO(synk): the wrapped `Deterministic(f)` returns opaque `states`
    # (e.g. attention cache) — the synthetic f here has none, so states=None.
    states = None
    return y, states


def _reference_forward(x, wf, bf, wg, bg):
    B, S, D = x.shape
    Dh = D // 2
    x1, x2 = x[..., :Dh], x[..., Dh:]
    f_x2 = _gelu_f32(x2 @ wf + bf[0])
    y1 = x1 + f_x2
    g_y1 = _gelu_f32(y1 @ wg + bg[0])
    y2 = x2 + g_y1
    return jnp.concatenate([y1, y2], axis=-1)


if __name__ == "__main__":
    # Small but lane-representative shapes: Dh = 128 (multiple of 128 lanes).
    B, S, D = 2, 16, 256
    Dh = D // 2

    key = jax.random.PRNGKey(0)
    kx, kwf, kbf, kwg, kbg = jax.random.split(key, 5)

    x = jax.random.normal(kx, (B, S, D), dtype=jnp.float32)
    wf = jax.random.normal(kwf, (Dh, Dh), dtype=jnp.float32) * 0.1
    bf = jax.random.normal(kbf, (1, Dh), dtype=jnp.float32) * 0.1
    wg = jax.random.normal(kwg, (Dh, Dh), dtype=jnp.float32) * 0.1
    bg = jax.random.normal(kbg, (1, Dh), dtype=jnp.float32) * 0.1

    y, states = reversible_block_forward(x, wf, bf, wg, bg)
    y = jax.block_until_ready(y)

    y_ref = _reference_forward(x, wf, bf, wg, bg)
    assert y.shape == (B, S, D)
    assert states is None
    assert jnp.allclose(y, y_ref, atol=1e-4, rtol=1e-4), "mismatch vs reference"

    print("KERNEL_OK")
</pallas_src>

<mosaic_0001>
module attributes {stable_mosaic.version = 11 : i64} {
  func.func @_rev_block_kernel(%arg0: i32, %arg1: memref<32x256xf32, #tpu.memory_space<vmem>>, %arg2: memref<128x128xf32, #tpu.memory_space<vmem>>, %arg3: memref<1x128xf32, #tpu.memory_space<vmem>>, %arg4: memref<128x128xf32, #tpu.memory_space<vmem>>, %arg5: memref<1x128xf32, #tpu.memory_space<vmem>>, %arg6: memref<32x256xf32, #tpu.memory_space<vmem>>) attributes {dimension_semantics = [#tpu.dimension_semantics<parallel>], iteration_bounds = array<i64: 1>, scalar_prefetch = 0 : i64, scratch_operands = 0 : i64, tpu.core_type = #tpu.core_type<tc>, window_params = [{transform_indices = @transform_0, window_bounds = array<i64: 32, 256>}, {pipeline_mode = #tpu.pipeline_mode<synchronous>, transform_indices = @transform_1, window_bounds = array<i64: 128, 128>}, {pipeline_mode = #tpu.pipeline_mode<synchronous>, transform_indices = @transform_2, window_bounds = array<i64: 1, 128>}, {pipeline_mode = #tpu.pipeline_mode<synchronous>, transform_indices = @transform_3, window_bounds = array<i64: 128, 128>}, {pipeline_mode = #tpu.pipeline_mode<synchronous>, transform_indices = @transform_4, window_bounds = array<i64: 1, 128>}, {transform_indices = @transform_5, window_bounds = array<i64: 32, 256>}]} {
    %c0 = arith.constant 0 : index
    %c0_0 = arith.constant 0 : index
    %0 = vector.load %arg1[%c0, %c0_0] : memref<32x256xf32, #tpu.memory_space<vmem>>, vector<32x128xf32>
    %c0_1 = arith.constant 0 : index
    %c128 = arith.constant 128 : index
    %1 = vector.load %arg1[%c0_1, %c128] : memref<32x256xf32, #tpu.memory_space<vmem>>, vector<32x128xf32>
    %c0_2 = arith.constant 0 : index
    %c0_3 = arith.constant 0 : index
    %2 = vector.load %arg2[%c0_2, %c0_3] : memref<128x128xf32, #tpu.memory_space<vmem>>, vector<128x128xf32>
    %cst = arith.constant dense<0.000000e+00> : vector<32x128xf32>
    %3 = tpu.matmul %1, %2, %cst {dimension_numbers = #tpu.dot_dimension_numbers<[1], [0], [0], [1], [0, 0, 1, 1], [], []>} : vector<32x128xf32>, vector<128x128xf32>, vector<32x128xf32> -> vector<32x128xf32>
    %c0_4 = arith.constant 0 : index
    %c0_5 = arith.constant 0 : index
    %4 = vector.load %arg3[%c0_4, %c0_5] : memref<1x128xf32, #tpu.memory_space<vmem>>, vector<1x128xf32>
    %5 = vector.broadcast %4 : vector<1x128xf32> to vector<32x128xf32>
    %6 = arith.addf %3, %5 : vector<32x128xf32>
    %cst_6 = arith.constant 5.000000e-01 : f32
    %7 = vector.broadcast %cst_6 : f32 to vector<32x128xf32>
    %8 = arith.mulf %7, %6 : vector<32x128xf32>
    %cst_7 = arith.constant 4.471500e-02 : f32
    %9 = vector.broadcast %cst_7 : f32 to vector<32x128xf32>
    %10 = arith.mulf %9, %6 : vector<32x128xf32>
    %11 = arith.mulf %10, %6 : vector<32x128xf32>
    %12 = arith.mulf %11, %6 : vector<32x128xf32>
    %13 = arith.addf %6, %12 : vector<32x128xf32>
    %cst_8 = arith.constant 0.797884583 : f32
    %14 = vector.broadcast %cst_8 : f32 to vector<32x128xf32>
    %15 = arith.mulf %14, %13 : vector<32x128xf32>
    %16 = math.tanh %15 : vector<32x128xf32>
    %cst_9 = arith.constant 1.000000e+00 : f32
    %17 = vector.broadcast %cst_9 : f32 to vector<32x128xf32>
    %18 = arith.addf %17, %16 : vector<32x128xf32>
    %19 = arith.mulf %8, %18 : vector<32x128xf32>
    %20 = arith.addf %0, %19 : vector<32x128xf32>
    %c0_10 = arith.constant 0 : index
    %c0_11 = arith.constant 0 : index
    %21 = vector.load %arg4[%c0_10, %c0_11] : memref<128x128xf32, #tpu.memory_space<vmem>>, vector<128x128xf32>
    %cst_12 = arith.constant dense<0.000000e+00> : vector<32x128xf32>
    %22 = tpu.matmul %20, %21, %cst_12 {dimension_numbers = #tpu.dot_dimension_numbers<[1], [0], [0], [1], [0, 0, 1, 1], [], []>} : vector<32x128xf32>, vector<128x128xf32>, vector<32x128xf32> -> vector<32x128xf32>
    %c0_13 = arith.constant 0 : index
    %c0_14 = arith.constant 0 : index
    %23 = vector.load %arg5[%c0_13, %c0_14] : memref<1x128xf32, #tpu.memory_space<vmem>>, vector<1x128xf32>
    %24 = vector.broadcast %23 : vector<1x128xf32> to vector<32x128xf32>
    %25 = arith.addf %22, %24 : vector<32x128xf32>
    %cst_15 = arith.constant 5.000000e-01 : f32
    %26 = vector.broadcast %cst_15 : f32 to vector<32x128xf32>
    %27 = arith.mulf %26, %25 : vector<32x128xf32>
    %cst_16 = arith.constant 4.471500e-02 : f32
    %28 = vector.broadcast %cst_16 : f32 to vector<32x128xf32>
    %29 = arith.mulf %28, %25 : vector<32x128xf32>
    %30 = arith.mulf %29, %25 : vector<32x128xf32>
    %31 = arith.mulf %30, %25 : vector<32x128xf32>
    %32 = arith.addf %25, %31 : vector<32x128xf32>
    %cst_17 = arith.constant 0.797884583 : f32
    %33 = vector.broadcast %cst_17 : f32 to vector<32x128xf32>
    %34 = arith.mulf %33, %32 : vector<32x128xf32>
    %35 = math.tanh %34 : vector<32x128xf32>
    %cst_18 = arith.constant 1.000000e+00 : f32
    %36 = vector.broadcast %cst_18 : f32 to vector<32x128xf32>
    %37 = arith.addf %36, %35 : vector<32x128xf32>
    %38 = arith.mulf %27, %37 : vector<32x128xf32>
    %39 = arith.addf %1, %38 : vector<32x128xf32>
    %c0_19 = arith.constant 0 : index
    %c0_20 = arith.constant 0 : index
    %40 = vector.load %arg6[%c0_19, %c0_20] : memref<32x256xf32, #tpu.memory_space<vmem>>, vector<32x128xf32>
    tpu.vector_store %arg6[%c0_19, %c0_20], %20 {strides = array<i32>} : memref<32x256xf32, #tpu.memory_space<vmem>>, vector<32x128xf32>,
    %c0_21 = arith.constant 0 : index
    %c128_22 = arith.constant 128 : index
    %41 = vector.load %arg6[%c0_21, %c128_22] : memref<32x256xf32, #tpu.memory_space<vmem>>, vector<32x128xf32>
    tpu.vector_store %arg6[%c0_21, %c128_22], %39 {strides = array<i32>} : memref<32x256xf32, #tpu.memory_space<vmem>>, vector<32x128xf32>,
    return
  }
  func.func @transform_0(%arg0: i32) -> (i32, i32) {
    %c0_i32 = arith.constant 0 : i32
    %c0_i32_0 = arith.constant 0 : i32
    return %arg0, %c0_i32 : i32, i32
  }
  func.func @transform_1(%arg0: i32) -> (i32, i32) {
    %c0_i32 = arith.constant 0 : i32
    %c0_i32_0 = arith.constant 0 : i32
    %c0_i32_1 = arith.constant 0 : i32
    return %c0_i32, %c0_i32_0 : i32, i32
  }
  func.func @transform_2(%arg0: i32) -> (i32, i32) {
    %c0_i32 = arith.constant 0 : i32
    %c0_i32_0 = arith.constant 0 : i32
    %c0_i32_1 = arith.constant 0 : i32
    return %c0_i32, %c0_i32_0 : i32, i32
  }
  func.func @transform_3(%arg0: i32) -> (i32, i32) {
    %c0_i32 = arith.constant 0 : i32
    %c0_i32_0 = arith.constant 0 : i32
    %c0_i32_1 = arith.constant 0 : i32
    return %c0_i32, %c0_i32_0 : i32, i32
  }
  func.func @transform_4(%arg0: i32) -> (i32, i32) {
    %c0_i32 = arith.constant 0 : i32
    %c0_i32_0 = arith.constant 0 : i32
    %c0_i32_1 = arith.constant 0 : i32
    return %c0_i32, %c0_i32_0 : i32, i32
  }
  func.func @transform_5(%arg0: i32) -> (i32, i32) {
    %c0_i32 = arith.constant 0 : i32
    %c0_i32_0 = arith.constant 0 : i32
    return %arg0, %c0_i32 : i32, i32
  }
}

</mosaic_0001>

<llo_original>
// kernel: tpu_custom_call.1
$region0: #{tpu_custom_call.1}
  #allocation0 [shape = 'u32[]', space=smem, size = 0x4, offset = 0x4, fixed_abs, tag = 'smem constant byte address 0x4 - core index']
  #allocation1 [shape = 'u32[144,128]{1,0:T(1,128)}', space=vmem, size = 0x12000, scoped, tag = 'internal scratch']
  %s0 = inlined_call_operand.hbm [shape: f32[32,256], index: 0, kind: input, shape index: {}]
  %s1 = inlined_call_operand.hbm [shape: f32[128,128], index: 1, kind: input, shape index: {}]
  %s2 = inlined_call_operand.vmem [shape: f32[1,128], index: 2, kind: input, shape index: {}]
  %s3 = inlined_call_operand.hbm [shape: f32[128,128], index: 3, kind: input, shape index: {}]
  %s4 = inlined_call_operand.vmem [shape: f32[1,128], index: 4, kind: input, shape index: {}]
  %s5 = inlined_call_operand.hbm [shape: f32[32,256], index: 5, kind: output, shape index: {}]
  %s6 = sld [smem:[#allocation0]]
  $region42: #{tpu_custom_call.1} parent=0
    _
  %s8 = ssub.s32 1, %s6
  %s9 = scalar_select 0, %s8, %s6
  $region1: #{tpu_custom_call.1} parent=0
    #allocation2 [shape = 'u8[32768]{0}', space=vmem, size = 0x8000, scoped, tag = 'input window, operand 0, single buffered']
    #allocation3 [shape = 's32[1]{0}', space=sflag, size = 0x4, scoped, tag = 'scoped memory for tpu_custom_call.1']
    #allocation4 [shape = 's32[1]{0}', space=sflag, size = 0x4, scoped, tag = 'scoped memory for tpu_custom_call.1']
    #allocation5 [shape = 'u8[65536]{0}', space=vmem, size = 0x10000, scoped, tag = 'input window, operand 1, single buffered']
    #allocation6 [shape = 's32[1]{0}', space=sflag, size = 0x4, scoped, tag = 'scoped memory for tpu_custom_call.1']
    #allocation7 [shape = 'u8[65536]{0}', space=vmem, size = 0x10000, scoped, tag = 'input window, operand 3, single buffered']
    #allocation8 [shape = 'u8[32768]{0}', space=vmem, size = 0x8000, scoped, tag = 'output window, operand 0, single buffered']
    %10 = vsyncpa [#allocation3], 0
    %11 = vsyncpa [#allocation6], 0
    %12 = vsyncpa [#allocation4], 0
    // Predicated region
    $region2: #{tpu_custom_call.1} parent=1 // pred_check
      _
    $region3: #{tpu_custom_call.1} parent=1 // pred_check_branch
      %14 = sbr.rel (0) target = $region5
    $region4: #{tpu_custom_call.1} parent=1 // pred_region
      %s16 = ssub.s32 1024, 1024
      %17 = vsyncadd [#allocation3], %s16
      %s18 = sshll.u32 [#allocation2], 4
      %s19 = int_to_ptr.vmem [resolvable:$true] %s18
      %24 = dma.hbm_to_vmem [thread:$0]  %s0, 1024, %s19, [#allocation3], 256, 256, 16
    $region5: #{tpu_custom_call.1} parent=1 // pred_fallthru
      _
    // Predicated region
    $region6: #{tpu_custom_call.1} parent=1 // pred_check
      _
    $region7: #{tpu_custom_call.1} parent=1 // pred_check_branch
      %26 = sbr.rel (0) target = $region9
    $region8: #{tpu_custom_call.1} parent=1 // pred_region
      %s28 = ssub.s32 2048, 2048
      %29 = vsyncadd [#allocation6], %s28
      %s30 = sshll.u32 [#allocation5], 4
      %s31 = int_to_ptr.vmem [resolvable:$true] %s30
      %36 = dma.hbm_to_vmem [thread:$0]  %s1, 2048, %s31, [#allocation6], 128, 128, 8
    $region9: #{tpu_custom_call.1} parent=1 // pred_fallthru
      _
    // Predicated region
    $region10: #{tpu_custom_call.1} parent=1 // pred_check
      _
    $region11: #{tpu_custom_call.1} parent=1 // pred_check_branch
      %38 = sbr.rel (0) target = $region13
    $region12: #{tpu_custom_call.1} parent=1 // pred_region
      _
    $region13: #{tpu_custom_call.1} parent=1 // pred_fallthru
      _
    // Predicated region
    $region14: #{tpu_custom_call.1} parent=1 // pred_check
      _
    $region15: #{tpu_custom_call.1} parent=1 // pred_check_branch
      %40 = sbr.rel (0) target = $region17
    $region16: #{tpu_custom_call.1} parent=1 // pred_region
      %s42 = ssub.s32 2048, 2048
      %43 = vsyncadd [#allocation6], %s42
      %s44 = sshll.u32 [#allocation7], 4
      %s45 = int_to_ptr.vmem [resolvable:$true] %s44
      %50 = dma.hbm_to_vmem [thread:$0]  %s3, 2048, %s45, [#allocation6], 128, 128, 8
    $region17: #{tpu_custom_call.1} parent=1 // pred_fallthru
      _
    // Predicated region
    $region18: #{tpu_custom_call.1} parent=1 // pred_check
      _
    $region19: #{tpu_custom_call.1} parent=1 // pred_check_branch
      %52 = sbr.rel (0) target = $region21
    $region20: #{tpu_custom_call.1} parent=1 // pred_region
      _
    $region21: #{tpu_custom_call.1} parent=1 // pred_fallthru
      _
    // Predicated region
    $region22: #{tpu_custom_call.1} parent=1 // pred_check
      _
    $region23: #{tpu_custom_call.1} parent=1 // pred_check_branch
      %54 = sbr.rel (0) target = $region25
    $region24: #{tpu_custom_call.1} parent=1 // pred_region
      %55 = dma.done [#allocation3], 1024
    $region25: #{tpu_custom_call.1} parent=1 // pred_fallthru
      _
    // Predicated region
    $region26: #{tpu_custom_call.1} parent=1 // pred_check
      _
    $region27: #{tpu_custom_call.1} parent=1 // pred_check_branch
      %57 = sbr.rel (0) target = $region29
    $region28: #{tpu_custom_call.1} parent=1 // pred_region
      %58 = dma.done [#allocation6], 2048
    $region29: #{tpu_custom_call.1} parent=1 // pred_fallthru
      _
    // Predicated region
    $region30: #{tpu_custom_call.1} parent=1 // pred_check
      _
    $region31: #{tpu_custom_call.1} parent=1 // pred_check_branch
      %60 = sbr.rel (0) target = $region33
    $region32: #{tpu_custom_call.1} parent=1 // pred_region
      %61 = dma.done [#allocation6], 2048
    $region33: #{tpu_custom_call.1} parent=1 // pred_fallthru
      _
    %v62 = vld [vmem:[#allocation2] sm:$0xff]
    %v63 = vld [vmem:[#allocation2 + $0x10] sm:$0xff]
    %v64 = vld [vmem:[#allocation2 + $0x20] sm:$0xff]
    %v65 = vld [vmem:[#allocation2 + $0x30] sm:$0xff]
    %v66 = vld [vmem:[#allocation2 + $0x8] sm:$0xff]
    %v67 = vld [vmem:[#allocation2 + $0x18] sm:$0xff]
    %v68 = vld [vmem:[#allocation2 + $0x28] sm:$0xff]
    %v69 = vld [vmem:[#allocation2 + $0x38] sm:$0xff]
    %v70 = vld [vmem:[#allocation5] sm:$0xff]
    %v71 = vld [vmem:[#allocation5 + $0x8] sm:$0xff]
    %v72 = vld [vmem:[#allocation5 + $0x10] sm:$0xff]
    %v73 = vld [vmem:[#allocation5 + $0x18] sm:$0xff]
    %v74 = vld [vmem:[#allocation5 + $0x20] sm:$0xff]
    %v75 = vld [vmem:[#allocation5 + $0x28] sm:$0xff]
    %v76 = vld [vmem:[#allocation5 + $0x30] sm:$0xff]
    %v77 = vld [vmem:[#allocation5 + $0x38] sm:$0xff]
    %v78 = vld [vmem:[#allocation5 + $0x40] sm:$0xff]
    %v79 = vld [vmem:[#allocation5 + $0x48] sm:$0xff]
    %v80 = vld [vmem:[#allocation5 + $0x50] sm:$0xff]
    %v81 = vld [vmem:[#allocation5 + $0x58] sm:$0xff]
    %v82 = vld [vmem:[#allocation5 + $0x60] sm:$0xff]
    %v83 = vld [vmem:[#allocation5 + $0x68] sm:$0xff]
    %v84 = vld [vmem:[#allocation5 + $0x70] sm:$0xff]
    %v85 = vld [vmem:[#allocation5 + $0x78] sm:$0xff]
    %v86 = vld [vmem:[%s2] sm:$0x1]
    %v88 = vlaneseq
    %v89 = vshrl.u32 %v88, 7
    %v90 = vsub.s32 0, %v89
    %v91 = vrot.slane %v86, %v90
    %93 = vmatprep.subr.mxu0 0.0
    %94 = vmatpush1.msra.mxu0 %v70
    %95 = vmatprep.subr.mxu0 0.0
    %96 = vmatpush1.msra.mxu0 %v71
    %97 = vmatprep.subr.mxu0 0.0
    %98 = vmatpush1.msra.mxu0 %v72
    %99 = vmatprep.subr.mxu0 0.0
    %100 = vmatpush1.msra.mxu0 %v73
    %101 = vmatprep.subr.mxu0 0.0
    %102 = vmatpush1.msra.mxu0 %v74
    %103 = vmatprep.subr.mxu0 0.0
    %104 = vmatpush1.msra.mxu0 %v75
    %105 = vmatprep.subr.mxu0 0.0
    %106 = vmatpush1.msra.mxu0 %v76
    %107 = vmatprep.subr.mxu0 0.0
    %108 = vmatpush1.msra.mxu0 %v77
    %109 = vmatprep.subr.mxu0 0.0
    %110 = vmatpush1.msra.mxu0 %v78
    %111 = vmatprep.subr.mxu0 0.0
    %112 = vmatpush1.msra.mxu0 %v79
    %113 = vmatprep.subr.mxu0 0.0
    %114 = vmatpush1.msra.mxu0 %v80
    %115 = vmatprep.subr.mxu0 0.0
    %116 = vmatpush1.msra.mxu0 %v81
    %117 = vmatprep.subr.mxu0 0.0
    %118 = vmatpush1.msra.mxu0 %v82
    %119 = vmatprep.subr.mxu0 0.0
    %120 = vmatpush1.msra.mxu0 %v83
    %121 = vmatprep.subr.mxu0 0.0
    %122 = vmatpush1.msra.mxu0 %v84
    %123 = vmatprep.subr.mxu0 0.0
    %124 = vmatpush1.msra.mxu0 %v85
    %125 = vmatprep.subr.mxu0 0.0
    %126 = vmatpush1.msra.mxu0 0.0
    %127 = vmatprep.subr.mxu0 0.0
    %128 = vmatpush1.msra.mxu0 0.0
    %129 = vmatprep.subr.mxu0 0.0
    %130 = vmatpush1.msra.mxu0 0.0
    %131 = vmatprep.subr.mxu0 0.0
    %132 = vmatpush1.msra.mxu0 0.0
    %133 = vmatprep.subr.mxu0 0.0
    %134 = vmatpush1.msra.mxu0 0.0
    %135 = vmatprep.subr.mxu0 0.0
    %136 = vmatpush1.msra.mxu0 0.0
    %137 = vmatprep.subr.mxu0 0.0
    %138 = vmatpush1.msra.mxu0 0.0
    %139 = vmatprep.subr.mxu0 0.0
    %140 = vmatpush1.msra.mxu0 0.0
    %141 = vmatprep.subr.mxu0 0.0
    %142 = vmatpush1.msra.mxu0 0.0
    %143 = vmatprep.subr.mxu0 0.0
    %144 = vmatpush1.msra.mxu0 0.0
    %145 = vmatprep.subr.mxu0 0.0
    %146 = vmatpush1.msra.mxu0 0.0
    %147 = vmatprep.subr.mxu0 0.0
    %148 = vmatpush1.msra.mxu0 0.0
    %149 = vmatprep.subr.mxu0 0.0
    %150 = vmatpush1.msra.mxu0 0.0
    %151 = vmatprep.subr.mxu0 0.0
    %152 = vmatpush1.msra.mxu0 0.0
    %153 = vmatprep.subr.mxu0 0.0
    %154 = vmatpush1.msra.mxu0 0.0
    %155 = vmatprep.subr.mxu0 0.0
    %156 = vmatpush1.msra.mxu0 0.0
    %157 = vmatprep.mubr.f32.mxu0 0.0
    %158 = vmatmul.mubr.f32.gmra.mrb[0].mxu0 %v66
    %v159 = vpop.f32.mrb[0].mxu0
    %v160 = vadd.f32 %v91, %v159
    %v161 = vpop.f32.mrb[0].mxu0
    %162 = vmatprep.mubr.f32.mxu0 0.0
    %163 = vmatmul.mubr.f32.gmra.mrb[0].mxu0 %v67
    %v164 = vpop.f32.mrb[0].mxu0
    %v165 = vadd.f32 %v91, %v164
    %v166 = vpop.f32.mrb[0].mxu0
    %167 = vmatprep.mubr.f32.mxu0 0.0
    %168 = vmatmul.mubr.f32.gmra.mrb[0].mxu0 %v68
    %v169 = vpop.f32.mrb[0].mxu0
    %v170 = vadd.f32 %v91, %v169
    %v171 = vpop.f32.mrb[0].mxu0
    %172 = vmatprep.mubr.f32.mxu0 0.0
    %173 = vmatmul.mubr.f32.gmra.mrb[0].mxu0 %v69
    %v174 = vpop.f32.mrb[0].mxu0
    %v175 = vadd.f32 %v91, %v174
    %v176 = vpop.f32.mrb[0].mxu0
    %177 = vdwg.mxu0
    %v178 = vmul.f32 %v160, 0.5
    %v179 = vmul.f32 %v165, 0.5
    %v180 = vmul.f32 %v170, 0.5
    %v181 = vmul.f32 %v175, 0.5
    %v182 = vmul.f32 %v160, 0.044715
    %v183 = vmul.f32 %v165, 0.044715
    %v184 = vmul.f32 %v170, 0.044715
    %v185 = vmul.f32 %v175, 0.044715
    %v186 = vmul.f32 %v182, %v160
    %v187 = vmul.f32 %v183, %v165
    %v188 = vmul.f32 %v184, %v170
    %v189 = vmul.f32 %v185, %v175
    %v190 = vmul.f32 %v186, %v160
    %v191 = vmul.f32 %v187, %v165
    %v192 = vmul.f32 %v188, %v170
    %v193 = vmul.f32 %v189, %v175
    %v194 = vadd.f32 %v160, %v190
    %v195 = vadd.f32 %v165, %v191
    %v196 = vadd.f32 %v170, %v192
    %v197 = vadd.f32 %v175, %v193
    %v198 = vmul.f32 %v194, 0.7978846
    %v199 = vmul.f32 %v195, 0.7978846
    %v200 = vmul.f32 %v196, 0.7978846
    %v201 = vmul.f32 %v197, 0.7978846
    %v202 = vtanh.pop %v198
    %v203 = vtanh.pop %v199
    %v204 = vtanh.pop %v200
    %v205 = vtanh.pop %v201
    %v206 = vadd.f32 %v202, 1.0
    %v207 = vadd.f32 %v203, 1.0
    %v208 = vadd.f32 %v204, 1.0
    %v209 = vadd.f32 %v205, 1.0
    %v210 = vmul.f32 %v178, %v206
    %v211 = vmul.f32 %v179, %v207
    %v212 = vmul.f32 %v180, %v208
    %v213 = vmul.f32 %v181, %v209
    %v214 = vadd.f32 %v62, %v210
    %v215 = vadd.f32 %v63, %v211
    %v216 = vadd.f32 %v64, %v212
    %v217 = vadd.f32 %v65, %v213
    %v218 = vld [vmem:[#allocation7] sm:$0xff]
    %v219 = vld [vmem:[#allocation7 + $0x8] sm:$0xff]
    %v220 = vld [vmem:[#allocation7 + $0x10] sm:$0xff]
    %v221 = vld [vmem:[#allocation7 + $0x18] sm:$0xff]
    %v222 = vld [vmem:[#allocation7 + $0x20] sm:$0xff]
    %v223 = vld [vmem:[#allocation7 + $0x28] sm:$0xff]
    %v224 = vld [vmem:[#allocation7 + $0x30] sm:$0xff]
    %v225 = vld [vmem:[#allocation7 + $0x38] sm:$0xff]
    %v226 = vld [vmem:[#allocation7 + $0x40] sm:$0xff]
    %v227 = vld [vmem:[#allocation7 + $0x48] sm:$0xff]
    %v228 = vld [vmem:[#allocation7 + $0x50] sm:$0xff]
    %v229 = vld [vmem:[#allocation7 + $0x58] sm:$0xff]
    %v230 = vld [vmem:[#allocation7 + $0x60] sm:$0xff]
    %v231 = vld [vmem:[#allocation7 + $0x68] sm:$0xff]
    %v232 = vld [vmem:[#allocation7 + $0x70] sm:$0xff]
    %v233 = vld [vmem:[#allocation7 + $0x78] sm:$0xff]
    %v234 = vld [vmem:[%s4] sm:$0x1]
    %v236 = vlaneseq
    %v237 = vshrl.u32 %v236, 7
    %v238 = vsub.s32 0, %v237
    %v239 = vrot.slane %v234, %v238
    %241 = vmatprep.subr.mxu0 0.0
    %242 = vmatpush1.msra.mxu0 %v218
    %243 = vmatprep.subr.mxu0 0.0
    %244 = vmatpush1.msra.mxu0 %v219
    %245 = vmatprep.subr.mxu0 0.0
    %246 = vmatpush1.msra.mxu0 %v220
    %247 = vmatprep.subr.mxu0 0.0
    %248 = vmatpush1.msra.mxu0 %v221
    %249 = vmatprep.subr.mxu0 0.0
    %250 = vmatpush1.msra.mxu0 %v222
    %251 = vmatprep.subr.mxu0 0.0
    %252 = vmatpush1.msra.mxu0 %v223
    %253 = vmatprep.subr.mxu0 0.0
    %254 = vmatpush1.msra.mxu0 %v224
    %255 = vmatprep.subr.mxu0 0.0
    %256 = vmatpush1.msra.mxu0 %v225
    %257 = vmatprep.subr.mxu0 0.0
    %258 = vmatpush1.msra.mxu0 %v226
    %259 = vmatprep.subr.mxu0 0.0
    %260 = vmatpush1.msra.mxu0 %v227
    %261 = vmatprep.subr.mxu0 0.0
    %262 = vmatpush1.msra.mxu0 %v228
    %263 = vmatprep.subr.mxu0 0.0
    %264 = vmatpush1.msra.mxu0 %v229
    %265 = vmatprep.subr.mxu0 0.0
    %266 = vmatpush1.msra.mxu0 %v230
    %267 = vmatprep.subr.mxu0 0.0
    %268 = vmatpush1.msra.mxu0 %v231
    %269 = vmatprep.subr.mxu0 0.0
    %270 = vmatpush1.msra.mxu0 %v232
    %271 = vmatprep.subr.mxu0 0.0
    %272 = vmatpush1.msra.mxu0 %v233
    %273 = vmatprep.subr.mxu0 0.0
    %274 = vmatpush1.msra.mxu0 0.0
    %275 = vmatprep.subr.mxu0 0.0
    %276 = vmatpush1.msra.mxu0 0.0
    %277 = vmatprep.subr.mxu0 0.0
    %278 = vmatpush1.msra.mxu0 0.0
    %279 = vmatprep.subr.mxu0 0.0
    %280 = vmatpush1.msra.mxu0 0.0
    %281 = vmatprep.subr.mxu0 0.0
    %282 = vmatpush1.msra.mxu0 0.0
    %283 = vmatprep.subr.mxu0 0.0
    %284 = vmatpush1.msra.mxu0 0.0
    %285 = vmatprep.subr.mxu0 0.0
    %286 = vmatpush1.msra.mxu0 0.0
    %287 = vmatprep.subr.mxu0 0.0
    %288 = vmatpush1.msra.mxu0 0.0
    %289 = vmatprep.subr.mxu0 0.0
    %290 = vmatpush1.msra.mxu0 0.0
    %291 = vmatprep.subr.mxu0 0.0
    %292 = vmatpush1.msra.mxu0 0.0
    %293 = vmatprep.subr.mxu0 0.0
    %294 = vmatpush1.msra.mxu0 0.0
    %295 = vmatprep.subr.mxu0 0.0
    %296 = vmatpush1.msra.mxu0 0.0
    %297 = vmatprep.subr.mxu0 0.0
    %298 = vmatpush1.msra.mxu0 0.0
    %299 = vmatprep.subr.mxu0 0.0
    %300 = vmatpush1.msra.mxu0 0.0
    %301 = vmatprep.subr.mxu0 0.0
    %302 = vmatpush1.msra.mxu0 0.0
    %303 = vmatprep.subr.mxu0 0.0
    %304 = vmatpush1.msra.mxu0 0.0
    %305 = vmatprep.mubr.f32.mxu0 0.0
    %306 = vmatmul.mubr.f32.gmra.mrb[0].mxu0 %v214
    %v307 = vpop.f32.mrb[0].mxu0
    %v308 = vadd.f32 %v239, %v307
    %v309 = vpop.f32.mrb[0].mxu0
    %310 = vmatprep.mubr.f32.mxu0 0.0
    %311 = vmatmul.mubr.f32.gmra.mrb[0].mxu0 %v215
    %v312 = vpop.f32.mrb[0].mxu0
    %v313 = vadd.f32 %v239, %v312
    %v314 = vpop.f32.mrb[0].mxu0
    %315 = vmatprep.mubr.f32.mxu0 0.0
    %316 = vmatmul.mubr.f32.gmra.mrb[0].mxu0 %v216
    %v317 = vpop.f32.mrb[0].mxu0
    %v318 = vadd.f32 %v239, %v317
    %v319 = vpop.f32.mrb[0].mxu0
    %320 = vmatprep.mubr.f32.mxu0 0.0
    %321 = vmatmul.mubr.f32.gmra.mrb[0].mxu0 %v217
    %v322 = vpop.f32.mrb[0].mxu0
    %v323 = vadd.f32 %v239, %v322
    %v324 = vpop.f32.mrb[0].mxu0
    %325 = vdwg.mxu0
    %v326 = vmul.f32 %v308, 0.5
    %v327 = vmul.f32 %v313, 0.5
    %v328 = vmul.f32 %v318, 0.5
    %v329 = vmul.f32 %v323, 0.5
    %v330 = vmul.f32 %v308, 0.044715
    %v331 = vmul.f32 %v313, 0.044715
    %v332 = vmul.f32 %v318, 0.044715
    %v333 = vmul.f32 %v323, 0.044715
    %v334 = vmul.f32 %v330, %v308
    %v335 = vmul.f32 %v331, %v313
    %v336 = vmul.f32 %v332, %v318
    %v337 = vmul.f32 %v333, %v323
    %v338 = vmul.f32 %v334, %v308
    %v339 = vmul.f32 %v335, %v313
    %v340 = vmul.f32 %v336, %v318
    %v341 = vmul.f32 %v337, %v323
    %v342 = vadd.f32 %v308, %v338
    %v343 = vadd.f32 %v313, %v339
    %v344 = vadd.f32 %v318, %v340
    %v345 = vadd.f32 %v323, %v341
    %v346 = vmul.f32 %v342, 0.7978846
    %v347 = vmul.f32 %v343, 0.7978846
    %v348 = vmul.f32 %v344, 0.7978846
    %v349 = vmul.f32 %v345, 0.7978846
    %v350 = vtanh.pop %v346
    %v351 = vtanh.pop %v347
    %v352 = vtanh.pop %v348
    %v353 = vtanh.pop %v349
    %v354 = vadd.f32 %v350, 1.0
    %v355 = vadd.f32 %v351, 1.0
    %v356 = vadd.f32 %v352, 1.0
    %v357 = vadd.f32 %v353, 1.0
    %v358 = vmul.f32 %v326, %v354
    %v359 = vmul.f32 %v327, %v355
    %v360 = vmul.f32 %v328, %v356
    %v361 = vmul.f32 %v329, %v357
    %v362 = vadd.f32 %v66, %v358
    %v363 = vadd.f32 %v67, %v359
    %v364 = vadd.f32 %v68, %v360
    %v365 = vadd.f32 %v69, %v361
    %366 = vst [vmem:[#allocation8] sm:$0xff] %v214
    %367 = vst [vmem:[#allocation8 + $0x10] sm:$0xff] %v215
    %368 = vst [vmem:[#allocation8 + $0x20] sm:$0xff] %v216
    %369 = vst [vmem:[#allocation8 + $0x30] sm:$0xff] %v217
    %370 = vst [vmem:[#allocation8 + $0x8] sm:$0xff] %v362
    %371 = vst [vmem:[#allocation8 + $0x18] sm:$0xff] %v363
    %372 = vst [vmem:[#allocation8 + $0x28] sm:$0xff] %v364
    %373 = vst [vmem:[#allocation8 + $0x38] sm:$0xff] %v365
    // Predicated region
    $region34: #{tpu_custom_call.1} parent=1 // pred_check
      _
    $region35: #{tpu_custom_call.1} parent=1 // pred_check_branch
      %375 = sbr.rel (0) target = $region37
    $region36: #{tpu_custom_call.1} parent=1 // pred_region
      %s377 = ssub.s32 1024, 1024
      %378 = vsyncadd [#allocation4], %s377
      %s379 = sshll.u32 [#allocation8], 4
      %s380 = int_to_ptr.vmem [resolvable:$true] %s379
      %385 = dma.vmem_to_hbm [thread:$0]  %s380, 1024, %s5, [#allocation4], 256, 256, 16
    $region37: #{tpu_custom_call.1} parent=1 // pred_fallthru
      _
    // Predicated region
    $region38: #{tpu_custom_call.1} parent=1 // pred_check
      _
    $region39: #{tpu_custom_call.1} parent=1 // pred_check_branch
      %387 = sbr.rel (0) target = $region41
    $region40: #{tpu_custom_call.1} parent=1 // pred_region
      %388 = dma.done [#allocation4], 1024
    $region41: #{tpu_custom_call.1} parent=1 // pred_fallthru
      _
    %389 = vsyncpa [#allocation3], 1
    %390 = vsyncpa [#allocation6], 1
    %391 = vsyncpa [#allocation4], 1

</llo_original>
